<compile_context>
chip_gen: v6e
topology: v6e:2x2x1
jax: 0.10.0
libtpu: 0.0.40
codegen_flags: <defaults>
</compile_context>

<pallas_src>
import functools

import jax
import jax.numpy as jnp
from jax.experimental import pallas as pl
from jax.experimental.pallas import tpu as pltpu


# ----------------------------------------------------------------------------
# packed-parameter layout (static, shared by packer and kernel)
# ----------------------------------------------------------------------------
def _align8(n):
    return (n + 7) & ~7


def _param_layout(c_in, hidden):
    """Row offsets of each parameter inside the packed (rows, hidden) buffer."""
    off = {}
    r = 0
    off["wc"] = r; r = _align8(r + 3 * c_in)   # conv weight, (3*C, H)
    off["bc"] = r; r = _align8(r + 1)          # conv bias,   (1, H)
    off["wa"] = r; r = _align8(r + hidden)     # attn weight, (H, H)
    off["ba"] = r; r = _align8(r + 1)          # attn bias,   (1, H)
    off["v"]  = r; r = _align8(r + 1)          # attn vector, (1, H)
    off["wd"] = r; r = _align8(r + hidden)     # dec weight,  (H, H) zero-padded cols
    off["bd"] = r; r = _align8(r + 1)          # dec bias,    (1, H) zero-padded cols
    return off, _align8(r)


def pack_params(params):
    """Pack (wc, bc, wa, ba, v, wd, bd) into one lane-dense (rows, H) f32 buffer."""
    wc, bc, wa, ba, v, wd, bd = params
    _, c_in, hidden = wc.shape
    out_dim = wd.shape[1]
    assert out_dim <= hidden, "decoder out_dim must fit in the H-wide packed columns"
    off, total = _param_layout(c_in, hidden)
    buf = jnp.zeros((total, hidden), jnp.float32)
    buf = buf.at[off["wc"]:off["wc"] + 3 * c_in, :].set(wc.reshape(3 * c_in, hidden))
    buf = buf.at[off["bc"], :].set(bc.reshape(hidden))
    buf = buf.at[off["wa"]:off["wa"] + hidden, :].set(wa)
    buf = buf.at[off["ba"], :].set(ba.reshape(hidden))
    buf = buf.at[off["v"], :].set(v.reshape(hidden))                 # (H,1) -> row
    buf = buf.at[off["wd"]:off["wd"] + hidden, :out_dim].set(wd)     # pad cols w/ 0
    buf = buf.at[off["bd"], :out_dim].set(bd.reshape(out_dim))
    return buf


# ----------------------------------------------------------------------------
# fused kernel
# ----------------------------------------------------------------------------
def seq2seq_kernel(xw_ref, p_ref, out_ref):
    BL, KC = xw_ref.shape            # (B*L, 3*C) im2col slab
    H = p_ref.shape[1]
    B = out_ref.shape[0]             # out_ref is the full lane-aligned (B, H) slab
    L = BL // B
    off, _ = _param_layout(KC // 3, H)

    xw = xw_ref[...]                                   # (B*L, 3C) f32
    wc = p_ref[off["wc"]:off["wc"] + KC, :]            # (3C, H)
    bc = p_ref[off["bc"]:off["bc"] + 1, :]             # (1, H)
    wa = p_ref[off["wa"]:off["wa"] + H, :]             # (H, H)
    ba = p_ref[off["ba"]:off["ba"] + 1, :]             # (1, H)
    v  = p_ref[off["v"]:off["v"] + 1, :]               # (1, H)
    wd = p_ref[off["wd"]:off["wd"] + H, :]             # (H, H) cols >= OUT are zero
    bd = p_ref[off["bd"]:off["bd"] + 1, :]             # (1, H) cols >= OUT are zero

    # ---- encoder: Conv1d(k=3, pad=1) as ONE im2col matmul + ReLU -------------
    h = jnp.dot(xw, wc, preferred_element_type=jnp.float32) + bc      # (B*L, H)
    h = jnp.maximum(h, 0.0)

    # ---- decoder reassociated ahead of the softmax ----------------------------
    # out = (sum_l alpha_l * h_l) @ wd + bd == sum_l alpha_l * (h_l @ wd) + bd
    # (wd linear, sum_l alpha_l == 1). hd is independent of the tanh/softmax
    # chain, so it issues under the EUP/XLU work instead of after it.
    hd = jnp.dot(h, wd, preferred_element_type=jnp.float32)           # (B*L, H)

    # ---- attention energies ---------------------------------------------------
    e = jnp.tanh(jnp.dot(h, wa, preferred_element_type=jnp.float32) + ba)  # (B*L, H)

    # scores via VPU multiply + XLU lane reduce (no N=1 matmul); softmax kept in
    # the (B, L, 1) sublane layout so alpha broadcasts straight onto hd3's lanes.
    s = jnp.sum(e * v, axis=-1, keepdims=True).reshape(B, L, 1)       # (B, L, 1)
    s = s - jnp.max(s, axis=1, keepdims=True)                         # stable softmax
    p = jnp.exp(s)
    denom = jnp.sum(p, axis=1, keepdims=True)                         # (B, 1, 1)
    alpha = p * pl.reciprocal(denom, approx=True)                     # (B, L, 1)

    # ---- context + decoder output as a VPU/XLU weighted sum ------------------
    hd3 = hd.reshape(B, L, H)
    out = jnp.sum(alpha * hd3, axis=1) + bd                           # (B, H)
    out_ref[...] = out.astype(out_ref.dtype)                          # unmasked store


# ----------------------------------------------------------------------------
# jitted wrapper: NCL -> im2col slab, single pallas_call
# ----------------------------------------------------------------------------
@functools.partial(jax.jit, static_argnames="out_dim")
def seq2seq_forward(x_ncl, packed, *, out_dim):
    """x_ncl: (B, C_in, L) float32 in PyTorch Conv1d layout."""
    B, C, L = x_ncl.shape
    H = packed.shape[1]

    # glue: NCL -> NLC, pad length by 1, im2col to (B*L, 3*C).
    # allow_input_fusion lets XLA fold this producer fusion into the Mosaic
    # custom call (no separate dispatch / HBM round-trip for xw).
    x = jnp.transpose(x_ncl, (0, 2, 1))                       # (B, L, C)
    xp = jnp.pad(x, ((0, 0), (1, 1), (0, 0)))                 # (B, L+2, C)
    xw = jnp.concatenate(
        [xp[:, 0:L, :], xp[:, 1:L + 1, :], xp[:, 2:L + 2, :]], axis=-1)
    xw = xw.reshape(B * L, 3 * C)

    vmem = pl.BlockSpec(memory_space=pltpu.MemorySpace.VMEM)
    fn = pl.pallas_call(
        seq2seq_kernel,
        out_shape=jax.ShapeDtypeStruct((B, H), jnp.float32),  # full lane-aligned slab
        in_specs=[vmem, vmem],
        out_specs=vmem,
        compiler_params=pltpu.CompilerParams(
            allow_input_fusion=[True, False],
            vmem_limit_bytes=32 << 20),
    )
    out_full = fn(xw, packed)
    # slice to the real decoder width here, where it fuses into the consumer
    return out_full[:, :out_dim]


# ----------------------------------------------------------------------------
# pure-JAX reference (identical semantics) for the correctness check
# ----------------------------------------------------------------------------
def reference_forward(x_ncl, params):
    wc, bc, wa, ba, v, wd, bd = params
    B, C, L = x_ncl.shape
    x = jnp.transpose(x_ncl, (0, 2, 1))
    xp = jnp.pad(x, ((0, 0), (1, 1), (0, 0)))
    h = sum(jnp.einsum('blc,ch->blh', xp[:, k:k + L, :], wc[k]) for k in range(3))
    h = jax.nn.relu(h + bc[None])                             # (B, L, H)
    e = jnp.tanh(jnp.einsum('blh,hk->blk', h, wa) + ba[None])
    scores = jnp.einsum('blh,ho->blo', e, v)                  # (B, L, 1)
    alpha = jax.nn.softmax(scores, axis=1)
    ctx = jnp.sum(alpha * h, axis=1)                          # (B, H)
    return ctx @ wd + bd


def init_params(key, c_in=4, hidden=32, out_dim=3):
    ks = jax.random.split(key, 7)
    wc = 0.1 * jax.random.normal(ks[0], (3, c_in, hidden), jnp.float32)
    bc = 0.1 * jax.random.normal(ks[1], (1, hidden), jnp.float32)
    wa = 0.1 * jax.random.normal(ks[2], (hidden, hidden), jnp.float32)
    ba = 0.1 * jax.random.normal(ks[3], (1, hidden), jnp.float32)
    v  = 0.1 * jax.random.normal(ks[4], (hidden, 1), jnp.float32)
    wd = 0.1 * jax.random.normal(ks[5], (hidden, out_dim), jnp.float32)
    bd = 0.1 * jax.random.normal(ks[6], (1, out_dim), jnp.float32)
    return (wc, bc, wa, ba, v, wd, bd)


if __name__ == "__main__":
    key = jax.random.PRNGKey(0)
    k_x, k_p = jax.random.split(key)

    B, C_IN, L, HIDDEN, OUT = 2, 4, 16, 32, 3
    x = jax.random.normal(k_x, (B, C_IN, L), jnp.float32)     # PyTorch NCL layout
    params = init_params(k_p, c_in=C_IN, hidden=HIDDEN, out_dim=OUT)
    packed = pack_params(params)                              # one-time param prep

    out = seq2seq_forward(x, packed, out_dim=OUT)
    out = jax.block_until_ready(out)

    ref = reference_forward(x, params)
    assert out.shape == (B, OUT)
    # tolerance accounts for the default bf16-pass MXU precision and the
    # approx (EUP) reciprocal in the softmax normalization
    assert jnp.allclose(out, ref, atol=2e-3, rtol=2e-3), (out, ref)

    print("KERNEL_OK")
</pallas_src>

<mosaic_0001>
module attributes {stable_mosaic.version = 11 : i64} {
  func.func @seq2seq_kernel(%arg0: memref<32x12xf32, #tpu.memory_space<vmem>>, %arg1: memref<112x32xf32, #tpu.memory_space<vmem>>, %arg2: memref<2x32xf32, #tpu.memory_space<vmem>>) attributes {dimension_semantics = [], scalar_prefetch = 0 : i64, scratch_operands = 0 : i64, tpu.core_type = #tpu.core_type<tc>} {
    %c0 = arith.constant 0 : index
    %c0_0 = arith.constant 0 : index
    %0 = vector.load %arg0[%c0, %c0_0] : memref<32x12xf32, #tpu.memory_space<vmem>>, vector<32x12xf32>
    %c0_1 = arith.constant 0 : index
    %c0_2 = arith.constant 0 : index
    %1 = vector.load %arg1[%c0_1, %c0_2] : memref<112x32xf32, #tpu.memory_space<vmem>>, vector<12x32xf32>
    %c16 = arith.constant 16 : index
    %c0_3 = arith.constant 0 : index
    %2 = vector.load %arg1[%c16, %c0_3] : memref<112x32xf32, #tpu.memory_space<vmem>>, vector<1x32xf32>
    %c24 = arith.constant 24 : index
    %c0_4 = arith.constant 0 : index
    %3 = vector.load %arg1[%c24, %c0_4] : memref<112x32xf32, #tpu.memory_space<vmem>>, vector<32x32xf32>
    %c56 = arith.constant 56 : index
    %c0_5 = arith.constant 0 : index
    %4 = vector.load %arg1[%c56, %c0_5] : memref<112x32xf32, #tpu.memory_space<vmem>>, vector<1x32xf32>
    %c64 = arith.constant 64 : index
    %c0_6 = arith.constant 0 : index
    %5 = vector.load %arg1[%c64, %c0_6] : memref<112x32xf32, #tpu.memory_space<vmem>>, vector<1x32xf32>
    %c72 = arith.constant 72 : index
    %c0_7 = arith.constant 0 : index
    %6 = vector.load %arg1[%c72, %c0_7] : memref<112x32xf32, #tpu.memory_space<vmem>>, vector<32x32xf32>
    %c104 = arith.constant 104 : index
    %c0_8 = arith.constant 0 : index
    %7 = vector.load %arg1[%c104, %c0_8] : memref<112x32xf32, #tpu.memory_space<vmem>>, vector<1x32xf32>
    %cst = arith.constant dense<0.000000e+00> : vector<32x32xf32>
    %8 = tpu.matmul %0, %1, %cst {dimension_numbers = #tpu.dot_dimension_numbers<[1], [0], [0], [1], [0, 0, 1, 1], [], []>} : vector<32x12xf32>, vector<12x32xf32>, vector<32x32xf32> -> vector<32x32xf32>
    %9 = vector.broadcast %2 : vector<1x32xf32> to vector<32x32xf32>
    %10 = arith.addf %8, %9 : vector<32x32xf32>
    %cst_9 = arith.constant 0.000000e+00 : f32
    %11 = vector.broadcast %cst_9 : f32 to vector<32x32xf32>
    %12 = arith.maximumf %10, %11 : vector<32x32xf32>
    %cst_10 = arith.constant dense<0.000000e+00> : vector<32x32xf32>
    %13 = tpu.matmul %12, %6, %cst_10 {dimension_numbers = #tpu.dot_dimension_numbers<[1], [0], [0], [1], [0, 0, 1, 1], [], []>} : vector<32x32xf32>, vector<32x32xf32>, vector<32x32xf32> -> vector<32x32xf32>
    %cst_11 = arith.constant dense<0.000000e+00> : vector<32x32xf32>
    %14 = tpu.matmul %12, %3, %cst_11 {dimension_numbers = #tpu.dot_dimension_numbers<[1], [0], [0], [1], [0, 0, 1, 1], [], []>} : vector<32x32xf32>, vector<32x32xf32>, vector<32x32xf32> -> vector<32x32xf32>
    %15 = vector.broadcast %4 : vector<1x32xf32> to vector<32x32xf32>
    %16 = arith.addf %14, %15 : vector<32x32xf32>
    %17 = math.tanh %16 : vector<32x32xf32>
    %18 = vector.broadcast %5 : vector<1x32xf32> to vector<32x32xf32>
    %19 = arith.mulf %17, %18 : vector<32x32xf32>
    %cst_12 = arith.constant dense<0.000000e+00> : vector<32xf32>
    %20 = vector.multi_reduction <add>, %19, %cst_12 [1] : vector<32x32xf32> to vector<32xf32>
    %21 = vector.shape_cast %20 : vector<32xf32> to vector<32x1xf32>
    %22 = vector.shape_cast %21 : vector<32x1xf32> to vector<2x16x1xf32>
    %cst_13 = arith.constant dense<0xFF800000> : vector<2x1xf32>
    %23 = vector.multi_reduction <maximumf>, %22, %cst_13 [1] : vector<2x16x1xf32> to vector<2x1xf32>
    %24 = vector.shape_cast %23 : vector<2x1xf32> to vector<2x1x1xf32>
    %25 = vector.broadcast %24 : vector<2x1x1xf32> to vector<2x16x1xf32>
    %26 = arith.subf %22, %25 : vector<2x16x1xf32>
    %27 = math.exp %26 : vector<2x16x1xf32>
    %cst_14 = arith.constant dense<0.000000e+00> : vector<2x1xf32>
    %28 = vector.multi_reduction <add>, %27, %cst_14 [1] : vector<2x16x1xf32> to vector<2x1xf32>
    %29 = vector.shape_cast %28 : vector<2x1xf32> to vector<2x1x1xf32>
    %30 = tpu.reciprocal %29 {approx = true} : vector<2x1x1xf32> -> vector<2x1x1xf32>
    %31 = vector.broadcast %30 : vector<2x1x1xf32> to vector<2x16x1xf32>
    %32 = arith.mulf %27, %31 : vector<2x16x1xf32>
    %33 = vector.shape_cast %13 : vector<32x32xf32> to vector<2x16x32xf32>
    %34 = vector.broadcast %32 : vector<2x16x1xf32> to vector<2x16x32xf32>
    %35 = arith.mulf %34, %33 : vector<2x16x32xf32>
    %cst_15 = arith.constant dense<0.000000e+00> : vector<2x32xf32>
    %36 = vector.multi_reduction <add>, %35, %cst_15 [1] : vector<2x16x32xf32> to vector<2x32xf32>
    %37 = vector.broadcast %7 : vector<1x32xf32> to vector<2x32xf32>
    %38 = arith.addf %36, %37 : vector<2x32xf32>
    %c0_16 = arith.constant 0 : index
    %c0_17 = arith.constant 0 : index
    %39 = vector.load %arg2[%c0_16, %c0_17] : memref<2x32xf32, #tpu.memory_space<vmem>>, vector<2x32xf32>
    tpu.vector_store %arg2[%c0_16, %c0_17], %38 {strides = array<i32>} : memref<2x32xf32, #tpu.memory_space<vmem>>, vector<2x32xf32>,
    return
  }
}

</mosaic_0001>

<llo_original>
// kernel: seq2seq_forward.1
$region0: #{seq2seq_forward.1}
  #allocation0 [shape = 'u32[]', space=smem, size = 0x4, offset = 0x4, fixed_abs, tag = 'smem constant byte address 0x4 - core index']
  #allocation1 [shape = 'u32[144,128]{1,0:T(1,128)}', space=vmem, size = 0x12000, scoped, tag = 'internal scratch']
  %s0 = inlined_call_operand.vmem [shape: f32[32,12], index: 0, kind: input, shape index: {}]
  %s1 = inlined_call_operand.vmem [shape: f32[112,32], index: 1, kind: input, shape index: {}]
  %s2 = inlined_call_operand.hbm [shape: f32[2,32], index: 2, kind: output, shape index: {}]
  %s3 = sld [smem:[#allocation0]]
  $region18: #{seq2seq_forward.1} parent=0
    _
  %s5 = ssub.s32 1, %s3
  %s6 = scalar_select 0, %s5, %s3
  $region1: #{seq2seq_forward.1} parent=0
    #allocation2 [shape = 'u8[1024]{0}', space=vmem, size = 0x400, scoped, tag = 'output window, operand 0, single buffered']
    #allocation3 [shape = 's32[1]{0}', space=sflag, size = 0x4, scoped, tag = 'scoped memory for seq2seq_forward.1']
    %7 = vsyncpa [#allocation3], 0
    // Predicated region
    $region2: #{seq2seq_forward.1} parent=1 // pred_check
      _
    $region3: #{seq2seq_forward.1} parent=1 // pred_check_branch
      %9 = sbr.rel (0) target = $region5
    $region4: #{seq2seq_forward.1} parent=1 // pred_region
      _
    $region5: #{seq2seq_forward.1} parent=1 // pred_fallthru
      _
    // Predicated region
    $region6: #{seq2seq_forward.1} parent=1 // pred_check
      _
    $region7: #{seq2seq_forward.1} parent=1 // pred_check_branch
      %11 = sbr.rel (0) target = $region9
    $region8: #{seq2seq_forward.1} parent=1 // pred_region
      _
    $region9: #{seq2seq_forward.1} parent=1 // pred_fallthru
      _
    %v12 = vld [vmem:[%s0] sm:$0xff]
    %v13 = vld [vmem:[%s0 + $0x8] sm:$0xff]
    %v14 = vld [vmem:[%s0 + $0x10] sm:$0xff]
    %v15 = vld [vmem:[%s0 + $0x18] sm:$0xff]
    %v16 = vld [vmem:[%s1] sm:$0xff]
    %v17 = vld [vmem:[%s1 + $0x8] sm:$0xf]
    %v18 = vld [vmem:[%s1 + $0x10] sm:$0x1]
    %v19 = vld [vmem:[%s1 + $0x18] sm:$0xff]
    %v20 = vld [vmem:[%s1 + $0x20] sm:$0xff]
    %v21 = vld [vmem:[%s1 + $0x28] sm:$0xff]
    %v22 = vld [vmem:[%s1 + $0x30] sm:$0xff]
    %v23 = vld [vmem:[%s1 + $0x38] sm:$0x1]
    %v24 = vld [vmem:[%s1 + $0x40] sm:$0x1]
    %v25 = vld [vmem:[%s1 + $0x48] sm:$0xff]
    %v26 = vld [vmem:[%s1 + $0x50] sm:$0xff]
    %v27 = vld [vmem:[%s1 + $0x58] sm:$0xff]
    %v28 = vld [vmem:[%s1 + $0x60] sm:$0xff]
    %v29 = vld [vmem:[%s1 + $0x68] sm:$0x1]
    %v30 = vlaneseq
    %v31 = vshrl.u32 %v30, 7
    %v32 = vsub.s32 0, %v31
    %v33 = vrot.slane %v18, %v32
    %vm34 = vcmask 97280
    %v36 = vsel %vm34, %v12, 0
    %v39 = vsel %vm34, %v13, 0
    %v42 = vsel %vm34, %v14, 0
    %v45 = vsel %vm34, %v15, 0
    %vm47 = vcmask 1043456
    %v49 = vsel %vm47, %v17, 0
    %51 = vmatprep.subr.mxu0 0.0
    %52 = vmatpush1.msra.mxu0 0.0
    %53 = vmatprep.subr.mxu0 0.0
    %54 = vmatpush1.msra.mxu0 0.0
    %55 = vmatprep.subr.mxu0 0.0
    %56 = vmatpush1.msra.mxu0 0.0
    %57 = vmatprep.subr.mxu0 0.0
    %58 = vmatpush1.msra.mxu0 0.0
    %59 = vmatprep.subr.mxu0 0.0
    %60 = vmatpush1.msra.mxu0 0.0
    %61 = vmatprep.subr.mxu0 0.0
    %62 = vmatpush1.msra.mxu0 0.0
    %63 = vmatprep.subr.mxu0 0.0
    %64 = vmatpush1.msra.mxu0 0.0
    %65 = vmatprep.subr.mxu0 0.0
    %66 = vmatpush1.msra.mxu0 0.0
    %67 = vmatprep.subr.mxu0 0.0
    %68 = vmatpush1.msra.mxu0 0.0
    %69 = vmatprep.subr.mxu0 0.0
    %70 = vmatpush1.msra.mxu0 0.0
    %71 = vmatprep.subr.mxu0 0.0
    %72 = vmatpush1.msra.mxu0 0.0
    %73 = vmatprep.subr.mxu0 0.0
    %74 = vmatpush1.msra.mxu0 0.0
    %75 = vmatprep.subr.mxu0 0.0
    %76 = vmatpush1.msra.mxu0 0.0
    %77 = vmatprep.subr.mxu0 0.0
    %78 = vmatpush1.msra.mxu0 0.0
    %79 = vmatprep.subr.mxu0 0.0
    %80 = vmatpush1.msra.mxu0 %v49
    %81 = vmatprep.subr.mxu0 0.0
    %82 = vmatpush1.msra.mxu0 %v16
    %83 = vmatprep.subr.mxu0 0.0
    %84 = vmatpush2.msra.mxu0 0.0
    %85 = vmatprep.subr.mxu0 0.0
    %86 = vmatpush2.msra.mxu0 0.0
    %87 = vmatprep.subr.mxu0 0.0
    %88 = vmatpush2.msra.mxu0 0.0
    %89 = vmatprep.subr.mxu0 0.0
    %90 = vmatpush2.msra.mxu0 0.0
    %91 = vmatprep.subr.mxu0 0.0
    %92 = vmatpush2.msra.mxu0 0.0
    %93 = vmatprep.subr.mxu0 0.0
    %94 = vmatpush2.msra.mxu0 0.0
    %95 = vmatprep.subr.mxu0 0.0
    %96 = vmatpush2.msra.mxu0 0.0
    %97 = vmatprep.subr.mxu0 0.0
    %98 = vmatpush2.msra.mxu0 0.0
    %99 = vmatprep.subr.mxu0 0.0
    %100 = vmatpush2.msra.mxu0 0.0
    %101 = vmatprep.subr.mxu0 0.0
    %102 = vmatpush2.msra.mxu0 0.0
    %103 = vmatprep.subr.mxu0 0.0
    %104 = vmatpush2.msra.mxu0 0.0
    %105 = vmatprep.subr.mxu0 0.0
    %106 = vmatpush2.msra.mxu0 0.0
    %107 = vmatprep.subr.mxu0 0.0
    %108 = vmatpush2.msra.mxu0 0.0
    %109 = vmatprep.subr.mxu0 0.0
    %110 = vmatpush2.msra.mxu0 0.0
    %111 = vmatprep.subr.mxu0 0.0
    %112 = vmatpush2.msra.mxu0 0.0
    %113 = vmatprep.subr.mxu0 0.0
    %114 = vmatpush2.msra.mxu0 0.0
    %115 = vmatprep.mubr.f32.mxu0 0.0
    %116 = vmatmul.mubr.f32.gmra.mxu0 %v36
    %v117 = vpop.f32.mrf.mxu0
    %v118 = vadd.f32 %v33, %v117
    %v119 = vpop.f32.mrf.mxu0
    %120 = vmatprep.mubr.f32.mxu0 0.0
    %121 = vmatmul.mubr.f32.gmra.mxu0 %v39
    %v122 = vpop.f32.mrf.mxu0
    %v123 = vadd.f32 %v33, %v122
    %v124 = vpop.f32.mrf.mxu0
    %125 = vmatprep.mubr.f32.mxu0 0.0
    %126 = vmatmul.mubr.f32.gmra.mxu0 %v42
    %v127 = vpop.f32.mrf.mxu0
    %v128 = vadd.f32 %v33, %v127
    %v129 = vpop.f32.mrf.mxu0
    %130 = vmatprep.mubr.f32.mxu0 0.0
    %131 = vmatmul.mubr.f32.gmra.mxu0 %v45
    %v132 = vpop.f32.mrf.mxu0
    %v133 = vadd.f32 %v33, %v132
    %v134 = vpop.f32.mrf.mxu0
    %135 = vdwg.mxu0
    %v136 = vmax.f32 %v118, 0.0
    %v137 = vmax.f32 %v123, 0.0
    %v138 = vmax.f32 %v128, 0.0
    %v139 = vmax.f32 %v133, 0.0
    %vm140 = vcmask 261120
    %v142 = vsel %vm140, %v136, 0
    %v145 = vsel %vm140, %v137, 0
    %v148 = vsel %vm140, %v138, 0
    %v151 = vsel %vm140, %v139, 0
    %153 = vmatprep.subr.mxu0 0.0
    %154 = vmatpush1.msra.mxu0 0.0
    %155 = vmatprep.subr.mxu0 0.0
    %156 = vmatpush1.msra.mxu0 0.0
    %157 = vmatprep.subr.mxu0 0.0
    %158 = vmatpush1.msra.mxu0 0.0
    %159 = vmatprep.subr.mxu0 0.0
    %160 = vmatpush1.msra.mxu0 0.0
    %161 = vmatprep.subr.mxu0 0.0
    %162 = vmatpush1.msra.mxu0 0.0
    %163 = vmatprep.subr.mxu0 0.0
    %164 = vmatpush1.msra.mxu0 0.0
    %165 = vmatprep.subr.mxu0 0.0
    %166 = vmatpush1.msra.mxu0 0.0
    %167 = vmatprep.subr.mxu0 0.0
    %168 = vmatpush1.msra.mxu0 0.0
    %169 = vmatprep.subr.mxu0 0.0
    %170 = vmatpush1.msra.mxu0 0.0
    %171 = vmatprep.subr.mxu0 0.0
    %172 = vmatpush1.msra.mxu0 0.0
    %173 = vmatprep.subr.mxu0 0.0
    %174 = vmatpush1.msra.mxu0 0.0
    %175 = vmatprep.subr.mxu0 0.0
    %176 = vmatpush1.msra.mxu0 0.0
    %177 = vmatprep.subr.mxu0 0.0
    %178 = vmatpush1.msra.mxu0 %v28
    %179 = vmatprep.subr.mxu0 0.0
    %180 = vmatpush1.msra.mxu0 %v27
    %181 = vmatprep.subr.mxu0 0.0
    %182 = vmatpush1.msra.mxu0 %v26
    %183 = vmatprep.subr.mxu0 0.0
    %184 = vmatpush1.msra.mxu0 %v25
    %185 = vmatprep.subr.mxu0 0.0
    %186 = vmatpush2.msra.mxu0 0.0
    %187 = vmatprep.subr.mxu0 0.0
    %188 = vmatpush2.msra.mxu0 0.0
    %189 = vmatprep.subr.mxu0 0.0
    %190 = vmatpush2.msra.mxu0 0.0
    %191 = vmatprep.subr.mxu0 0.0
    %192 = vmatpush2.msra.mxu0 0.0
    %193 = vmatprep.subr.mxu0 0.0
    %194 = vmatpush2.msra.mxu0 0.0
    %195 = vmatprep.subr.mxu0 0.0
    %196 = vmatpush2.msra.mxu0 0.0
    %197 = vmatprep.subr.mxu0 0.0
    %198 = vmatpush2.msra.mxu0 0.0
    %199 = vmatprep.subr.mxu0 0.0
    %200 = vmatpush2.msra.mxu0 0.0
    %201 = vmatprep.subr.mxu0 0.0
    %202 = vmatpush2.msra.mxu0 0.0
    %203 = vmatprep.subr.mxu0 0.0
    %204 = vmatpush2.msra.mxu0 0.0
    %205 = vmatprep.subr.mxu0 0.0
    %206 = vmatpush2.msra.mxu0 0.0
    %207 = vmatprep.subr.mxu0 0.0
    %208 = vmatpush2.msra.mxu0 0.0
    %209 = vmatprep.subr.mxu0 0.0
    %210 = vmatpush2.msra.mxu0 0.0
    %211 = vmatprep.subr.mxu0 0.0
    %212 = vmatpush2.msra.mxu0 0.0
    %213 = vmatprep.subr.mxu0 0.0
    %214 = vmatpush2.msra.mxu0 0.0
    %215 = vmatprep.subr.mxu0 0.0
    %216 = vmatpush2.msra.mxu0 0.0
    %217 = vmatprep.mubr.f32.mxu0 0.0
    %218 = vmatmul.mubr.f32.gmra.mxu0 %v142
    %v219 = vpop.f32.mrf.mxu0
    %v220 = vadd.f32 0.0, %v219
    %v221 = vpop.f32.mrf.mxu0
    %222 = vmatprep.mubr.f32.mxu0 0.0
    %223 = vmatmul.mubr.f32.gmra.mxu0 %v145
    %v224 = vpop.f32.mrf.mxu0
    %v225 = vadd.f32 0.0, %v224
    %v226 = vpop.f32.mrf.mxu0
    %227 = vmatprep.mubr.f32.mxu0 0.0
    %228 = vmatmul.mubr.f32.gmra.mxu0 %v148
    %v229 = vpop.f32.mrf.mxu0
    %v230 = vadd.f32 0.0, %v229
    %v231 = vpop.f32.mrf.mxu0
    %232 = vmatprep.mubr.f32.mxu0 0.0
    %233 = vmatmul.mubr.f32.gmra.mxu0 %v151
    %v234 = vpop.f32.mrf.mxu0
    %v235 = vadd.f32 0.0, %v234
    %v236 = vpop.f32.mrf.mxu0
    %237 = vdwg.mxu0
    %v238 = vlaneseq
    %v239 = vshrl.u32 %v238, 7
    %v240 = vsub.s32 0, %v239
    %v241 = vrot.slane %v23, %v240
    %242 = vmatprep.subr.mxu0 0.0
    %243 = vmatpush1.msra.mxu0 0.0
    %244 = vmatprep.subr.mxu0 0.0
    %245 = vmatpush1.msra.mxu0 0.0
    %246 = vmatprep.subr.mxu0 0.0
    %247 = vmatpush1.msra.mxu0 0.0
    %248 = vmatprep.subr.mxu0 0.0
    %249 = vmatpush1.msra.mxu0 0.0
    %250 = vmatprep.subr.mxu0 0.0
    %251 = vmatpush1.msra.mxu0 0.0
    %252 = vmatprep.subr.mxu0 0.0
    %253 = vmatpush1.msra.mxu0 0.0
    %254 = vmatprep.subr.mxu0 0.0
    %255 = vmatpush1.msra.mxu0 0.0
    %256 = vmatprep.subr.mxu0 0.0
    %257 = vmatpush1.msra.mxu0 0.0
    %258 = vmatprep.subr.mxu0 0.0
    %259 = vmatpush1.msra.mxu0 0.0
    %260 = vmatprep.subr.mxu0 0.0
    %261 = vmatpush1.msra.mxu0 0.0
    %262 = vmatprep.subr.mxu0 0.0
    %263 = vmatpush1.msra.mxu0 0.0
    %264 = vmatprep.subr.mxu0 0.0
    %265 = vmatpush1.msra.mxu0 0.0
    %266 = vmatprep.subr.mxu0 0.0
    %267 = vmatpush1.msra.mxu0 %v22
    %268 = vmatprep.subr.mxu0 0.0
    %269 = vmatpush1.msra.mxu0 %v21
    %270 = vmatprep.subr.mxu0 0.0
    %271 = vmatpush1.msra.mxu0 %v20
    %272 = vmatprep.subr.mxu0 0.0
    %273 = vmatpush1.msra.mxu0 %v19
    %274 = vmatprep.subr.mxu0 0.0
    %275 = vmatpush2.msra.mxu0 0.0
    %276 = vmatprep.subr.mxu0 0.0
    %277 = vmatpush2.msra.mxu0 0.0
    %278 = vmatprep.subr.mxu0 0.0
    %279 = vmatpush2.msra.mxu0 0.0
    %280 = vmatprep.subr.mxu0 0.0
    %281 = vmatpush2.msra.mxu0 0.0
    %282 = vmatprep.subr.mxu0 0.0
    %283 = vmatpush2.msra.mxu0 0.0
    %284 = vmatprep.subr.mxu0 0.0
    %285 = vmatpush2.msra.mxu0 0.0
    %286 = vmatprep.subr.mxu0 0.0
    %287 = vmatpush2.msra.mxu0 0.0
    %288 = vmatprep.subr.mxu0 0.0
    %289 = vmatpush2.msra.mxu0 0.0
    %290 = vmatprep.subr.mxu0 0.0
    %291 = vmatpush2.msra.mxu0 0.0
    %292 = vmatprep.subr.mxu0 0.0
    %293 = vmatpush2.msra.mxu0 0.0
    %294 = vmatprep.subr.mxu0 0.0
    %295 = vmatpush2.msra.mxu0 0.0
    %296 = vmatprep.subr.mxu0 0.0
    %297 = vmatpush2.msra.mxu0 0.0
    %298 = vmatprep.subr.mxu0 0.0
    %299 = vmatpush2.msra.mxu0 0.0
    %300 = vmatprep.subr.mxu0 0.0
    %301 = vmatpush2.msra.mxu0 0.0
    %302 = vmatprep.subr.mxu0 0.0
    %303 = vmatpush2.msra.mxu0 0.0
    %304 = vmatprep.subr.mxu0 0.0
    %305 = vmatpush2.msra.mxu0 0.0
    %306 = vmatprep.mubr.f32.mxu0 0.0
    %307 = vmatmul.mubr.f32.gmra.mxu0 %v142
    %v308 = vpop.f32.mrf.mxu0
    %v309 = vadd.f32 %v241, %v308
    %v310 = vpop.f32.mrf.mxu0
    %311 = vmatprep.mubr.f32.mxu0 0.0
    %312 = vmatmul.mubr.f32.gmra.mxu0 %v145
    %v313 = vpop.f32.mrf.mxu0
    %v314 = vadd.f32 %v241, %v313
    %v315 = vpop.f32.mrf.mxu0
    %316 = vmatprep.mubr.f32.mxu0 0.0
    %317 = vmatmul.mubr.f32.gmra.mxu0 %v148
    %v318 = vpop.f32.mrf.mxu0
    %v319 = vadd.f32 %v241, %v318
    %v320 = vpop.f32.mrf.mxu0
    %321 = vmatprep.mubr.f32.mxu0 0.0
    %322 = vmatmul.mubr.f32.gmra.mxu0 %v151
    %v323 = vpop.f32.mrf.mxu0
    %v324 = vadd.f32 %v241, %v323
    %v325 = vpop.f32.mrf.mxu0
    %326 = vdwg.mxu0
    %v327 = vtanh.pop %v309
    %v328 = vtanh.pop %v314
    %v329 = vtanh.pop %v319
    %v330 = vtanh.pop %v324
    %v331 = vlaneseq
    %v332 = vshrl.u32 %v331, 7
    %v333 = vsub.s32 0, %v332
    %v334 = vrot.slane %v24, %v333
    %v335 = vmul.f32 %v327, %v334
    %v336 = vmul.f32 %v328, %v334
    %v337 = vmul.f32 %v329, %v334
    %v338 = vmul.f32 %v330, %v334
    %v339 = vsel %vm140, %v335, 0.0
    %340 = vadd.xlane.f32.xlu0 %v339
    %v341 = vpop.xlane.xlu0 %340
    %v342 = vsel %vm140, %v336, 0.0
    %343 = vadd.xlane.f32.xlu0 %v342
    %v344 = vpop.xlane.xlu0 %343
    %v345 = vsel %vm140, %v337, 0.0
    %346 = vadd.xlane.f32.xlu0 %v345
    %v347 = vpop.xlane.xlu0 %346
    %v348 = vsel %vm140, %v338, 0.0
    %349 = vadd.xlane.f32.xlu0 %v348
    %v350 = vpop.xlane.xlu0 %349
    %v351 = vmax.f32 %v341, %v344
    %v352 = vrot.slane %v351, 4
    %v353 = vmax.f32 %v351, %v352
    %v354 = vrot.slane %v353, 2
    %v355 = vmax.f32 %v353, %v354
    %v356 = vrot.slane %v355, 1
    %v357 = vmax.f32 %v355, %v356
    %v358 = vmax.f32 %v347, %v350
    %v359 = vrot.slane %v358, 4
    %v360 = vmax.f32 %v358, %v359
    %v361 = vrot.slane %v360, 2
    %v362 = vmax.f32 %v360, %v361
    %v363 = vrot.slane %v362, 1
    %v364 = vmax.f32 %v362, %v363
    %v365 = vsub.f32 %v341, %v357
    %v366 = vsub.f32 %v344, %v357
    %v367 = vsub.f32 %v347, %v364
    %v368 = vsub.f32 %v350, %v364
    %v369 = vmul.f32 %v365, 1.442695
    %v370 = vpow.pop %v369
    %v371 = vmul.f32 %v366, 1.442695
    %v372 = vpow.pop %v371
    %v373 = vmul.f32 %v367, 1.442695
    %v374 = vpow.pop %v373
    %v375 = vmul.f32 %v368, 1.442695
    %v376 = vpow.pop %v375
    %v377 = vadd.f32 %v370, %v372
    %v378 = vrot.slane %v377, 4
    %v379 = vadd.f32 %v377, %v378
    %v380 = vrot.slane %v379, 2
    %v381 = vadd.f32 %v379, %v380
    %v382 = vrot.slane %v381, 1
    %v383 = vadd.f32 %v381, %v382
    %v384 = vadd.f32 %v374, %v376
    %v385 = vrot.slane %v384, 4
    %v386 = vadd.f32 %v384, %v385
    %v387 = vrot.slane %v386, 2
    %v388 = vadd.f32 %v386, %v387
    %v389 = vrot.slane %v388, 1
    %v390 = vadd.f32 %v388, %v389
    %v391 = vrcp.pop %v383
    %v392 = vrcp.pop %v390
    %v393 = vmul.f32 %v370, %v391
    %v394 = vmul.f32 %v372, %v391
    %v395 = vmul.f32 %v374, %v392
    %v396 = vmul.f32 %v376, %v392
    %v397 = vmul.f32 %v393, %v220
    %v398 = vmul.f32 %v394, %v225
    %v399 = vmul.f32 %v395, %v230
    %v400 = vmul.f32 %v396, %v235
    %v401 = vsel %vm140, %v397, 0.0
    %v402 = vsel %vm140, %v398, 0.0
    %v403 = vadd.f32 %v401, %v402
    %v404 = vrot.slane %v403, 4
    %v405 = vadd.f32 %v403, %v404
    %v406 = vrot.slane %v405, 2
    %v407 = vadd.f32 %v405, %v406
    %v408 = vrot.slane %v407, 1
    %v409 = vadd.f32 %v407, %v408
    %v410 = vsel %vm140, %v399, 0.0
    %v411 = vsel %vm140, %v400, 0.0
    %v412 = vadd.f32 %v410, %v411
    %v413 = vrot.slane %v412, 4
    %v414 = vadd.f32 %v412, %v413
    %v415 = vrot.slane %v414, 2
    %v416 = vadd.f32 %v414, %v415
    %v417 = vrot.slane %v416, 1
    %v418 = vadd.f32 %v416, %v417
    %v419 = vlaneseq
    %v420 = vshrl.u32 %v419, 7
    %v421 = vsub.s32 0, %v420
    %v422 = vrot.slane %v29, %v421
    %v423 = vadd.f32 %v409, %v422
    %v424 = vadd.f32 %v418, %v422
    %v427 = vrot.slane %v424, 7
    %vm428 = vcmask 1041409
    %v429 = vsel %vm428, %v427, %v423
    %vm431 = vcmask 254976
    %432 = vst.msk [vmem:[#allocation2] sm:$0x3] %vm431, %v429
    // Predicated region
    $region10: #{seq2seq_forward.1} parent=1 // pred_check
      _
    $region11: #{seq2seq_forward.1} parent=1 // pred_check_branch
      %434 = sbr.rel (0) target = $region13
    $region12: #{seq2seq_forward.1} parent=1 // pred_region
      %s436 = ssub.s32 32, 32
      %437 = vsyncadd [#allocation3], %s436
      %s439 = sshll.u32 [#allocation2], 4
      %s440 = int_to_ptr.vmem [resolvable:$true] %s439
      %442 = dma.vmem_to_hbm [thread:$0]  %s440, 32, %s2, [#allocation3]
    $region13: #{seq2seq_forward.1} parent=1 // pred_fallthru
      _
    // Predicated region
    $region14: #{seq2seq_forward.1} parent=1 // pred_check
      _
    $region15: #{seq2seq_forward.1} parent=1 // pred_check_branch
      %444 = sbr.rel (0) target = $region17
    $region16: #{seq2seq_forward.1} parent=1 // pred_region
      %445 = dma.done [#allocation3], 32
    $region17: #{seq2seq_forward.1} parent=1 // pred_fallthru
      _
    %446 = vsyncpa [#allocation3], 1

</llo_original>
